<compile_context>
chip_gen: v5e
topology: v5e:2x2
jax: 0.10.0
libtpu: 0.0.40
codegen_flags: <defaults>
</compile_context>

<pallas_src>
import jax
import jax.numpy as jnp
from jax.experimental import pallas as pl
from jax.experimental.pallas import tpu as pltpu


def _conv_block_kernel(x_ref, w1_ref, b1_ref, w2_ref, b2_ref, w3_ref, b3_ref,
                       w4_ref, b4_ref, o_ref, xp_ref, h1p_ref, h2p_ref):
    """One grid step = Nb batch elements, whole block fused.

    x_ref:   (Nb, C0, L)            input, channels-first (PyTorch layout)
    w*_ref:  (K, Cout, Cin)         per-tap matmul weights
    b*_ref:  (Cout, 1)              biases (broadcast over L)
    o_ref:   (Nb, C2, L)            output
    xp_ref / h1p_ref / h2p_ref:     (C, L+K-1) VMEM scratch, zero halo.
    """
    K = w1_ref.shape[0]
    Nb, _, L = x_ref.shape
    pad_l = (K - 1) // 2

    # Zero the scratch slabs once per grid step.  Only the [pad_l, pad_l+L)
    # window is ever overwritten below, so the halos stay zero for every
    # batch element processed in this step.
    xp_ref[...] = jnp.zeros_like(xp_ref)
    h1p_ref[...] = jnp.zeros_like(h1p_ref)
    h2p_ref[...] = jnp.zeros_like(h2p_ref)

    def conv(src_ref, w_ref, b_ref):
        # src_ref: (Cin, L+K-1) zero-padded activation in VMEM.
        cout = w_ref.shape[1]
        acc = jnp.zeros((cout, L), jnp.float32)
        for k in range(K):                                  # K shifted matmuls
            acc += jnp.dot(w_ref[k], src_ref[:, k:k + L],
                           preferred_element_type=jnp.float32)
        return acc + b_ref[...]                             # (Cout,1) -> (Cout,L)

    for b in range(Nb):                                     # static unroll
        xp_ref[:, pad_l:pad_l + L] = x_ref[b].astype(jnp.float32)

        h = jnp.maximum(conv(xp_ref, w1_ref, b1_ref), 0.0)  # act1(conv1)
        h1p_ref[:, pad_l:pad_l + L] = h

        h = jnp.maximum(conv(h1p_ref, w2_ref, b2_ref), 0.0)  # act2(conv2)
        h2p_ref[:, pad_l:pad_l + L] = h

        h = jnp.maximum(conv(h2p_ref, w3_ref, b3_ref), 0.0)  # act3(conv3)
        sc = conv(xp_ref, w4_ref, b4_ref)                    # conv4 shortcut
        o_ref[b] = jnp.maximum(h + sc, 0.0).astype(o_ref.dtype)  # act4


def _pick_batch_block(n, max_nb=8):
    """Largest divisor of n that is <= max_nb (amortize per-step overhead)."""
    nb = min(n, max_nb)
    while n % nb:
        nb -= 1
    return nb


def convolution_block_pallas(x, params):
    """x: (N, C0, L) float32 -> (N, C2, L) float32 (PyTorch NCL layout)."""
    N, C0, L = x.shape
    w1, w2, w3, w4 = (params[k] for k in ("w1", "w2", "w3", "w4"))
    b1, b2, b3, b4 = (params[k] for k in ("b1", "b2", "b3", "b4"))
    K = w1.shape[2]
    C1 = w1.shape[0]
    C2 = w3.shape[0]
    Lp = L + K - 1

    # (Cout, Cin, K) -> (K, Cout, Cin): per-tap (Cout, Cin) matmul weights.
    ws = [jnp.transpose(w, (2, 0, 1)) for w in (w1, w2, w3, w4)]
    bs = [b.reshape(-1, 1).astype(jnp.float32) for b in (b1, b2, b3, b4)]

    Nb = _pick_batch_block(N)

    inputs = [x]
    in_specs = [pl.BlockSpec((Nb, C0, L), lambda n: (n, 0, 0))]
    for w, b in zip(ws, bs):
        inputs += [w, b]
        in_specs += [pl.BlockSpec(w.shape, lambda n: (0, 0, 0)),
                     pl.BlockSpec(b.shape, lambda n: (0, 0))]

    return pl.pallas_call(
        _conv_block_kernel,
        out_shape=jax.ShapeDtypeStruct((N, C2, L), x.dtype),
        grid=(N // Nb,),
        in_specs=in_specs,
        out_specs=pl.BlockSpec((Nb, C2, L), lambda n: (n, 0, 0)),
        scratch_shapes=[pltpu.VMEM((C0, Lp), jnp.float32),
                        pltpu.VMEM((C1, Lp), jnp.float32),
                        pltpu.VMEM((C2, Lp), jnp.float32)],
        compiler_params=pltpu.CompilerParams(
            dimension_semantics=("parallel",)),
    )(*inputs)


convolution_block_forward = jax.jit(convolution_block_pallas)


def init_convolution_block_params(key, filters, kernel_size):
    """Deterministic init mimicking PyTorch Conv1d default (U[+/- 1/sqrt(fan_in)])."""
    specs = [
        ("1", filters[0], filters[1]),
        ("2", filters[1], filters[2]),
        ("3", filters[2], filters[2]),
        ("4", filters[0], filters[2]),
    ]
    params = {}
    for name, cin, cout in specs:
        key, kw, kb = jax.random.split(key, 3)
        bound = 1.0 / (cin * kernel_size) ** 0.5
        params["w" + name] = jax.random.uniform(
            kw, (cout, cin, kernel_size), jnp.float32, -bound, bound)
        params["b" + name] = jax.random.uniform(
            kb, (cout,), jnp.float32, -bound, bound)
    return params


# ---------------------------- pure-JAX reference ----------------------------

def _ref_conv1d(x, w_pt, b):
    K = w_pt.shape[2]
    pad_left = (K - 1) // 2
    pad_right = K - 1 - pad_left
    y = jax.lax.conv_general_dilated(
        x, w_pt, window_strides=(1,), padding=[(pad_left, pad_right)],
        dimension_numbers=("NCH", "OIH", "NCH"))
    return y + b[None, :, None]


def _ref_block(x, p):
    h = jax.nn.relu(_ref_conv1d(x, p["w1"], p["b1"]))     # act1(conv1)
    h = jax.nn.relu(_ref_conv1d(h, p["w2"], p["b2"]))     # act2(conv2)
    h = jax.nn.relu(_ref_conv1d(h, p["w3"], p["b3"]))     # act3(conv3)
    sc = _ref_conv1d(x, p["w4"], p["b4"])                 # conv4 shortcut
    return jax.nn.relu(h + sc)                            # act4


if __name__ == "__main__":
    filters = [4, 8, 8]       # [C_in, C_mid, C_out]
    kernel_size = 3
    N, L = 2, 16

    key = jax.random.PRNGKey(0)
    key, kx = jax.random.split(key)
    x = jax.random.normal(kx, (N, filters[0], L), jnp.float32)
    params = init_convolution_block_params(key, filters, kernel_size)

    out = convolution_block_forward(x, params)
    out = jax.block_until_ready(out)

    ref = _ref_block(x, params)
    assert out.shape == (N, filters[2], L)
    assert jnp.allclose(out, ref, atol=1e-5, rtol=1e-5), (
        float(jnp.max(jnp.abs(out - ref))))
    print("KERNEL_OK")
</pallas_src>

<mosaic_0001>
module attributes {stable_mosaic.version = 11 : i64} {
  func.func @_conv_block_kernel(%arg0: i32, %arg1: memref<2x4x16xf32, #tpu.memory_space<vmem>>, %arg2: memref<3x8x4xf32, #tpu.memory_space<vmem>>, %arg3: memref<8x1xf32, #tpu.memory_space<vmem>>, %arg4: memref<3x8x8xf32, #tpu.memory_space<vmem>>, %arg5: memref<8x1xf32, #tpu.memory_space<vmem>>, %arg6: memref<3x8x8xf32, #tpu.memory_space<vmem>>, %arg7: memref<8x1xf32, #tpu.memory_space<vmem>>, %arg8: memref<3x8x4xf32, #tpu.memory_space<vmem>>, %arg9: memref<8x1xf32, #tpu.memory_space<vmem>>, %arg10: memref<2x8x16xf32, #tpu.memory_space<vmem>>, %arg11: memref<4x18xf32, #tpu.memory_space<vmem>>, %arg12: memref<8x18xf32, #tpu.memory_space<vmem>>, %arg13: memref<8x18xf32, #tpu.memory_space<vmem>>) attributes {dimension_semantics = [#tpu.dimension_semantics<parallel>], iteration_bounds = array<i64: 1>, scalar_prefetch = 0 : i64, scratch_operands = 3 : i64, tpu.core_type = #tpu.core_type<tc>, window_params = [{transform_indices = @transform_0, window_bounds = array<i64: 2, 4, 16>}, {pipeline_mode = #tpu.pipeline_mode<synchronous>, transform_indices = @transform_1, window_bounds = array<i64: 3, 8, 4>}, {pipeline_mode = #tpu.pipeline_mode<synchronous>, transform_indices = @transform_2, window_bounds = array<i64: 8, 1>}, {pipeline_mode = #tpu.pipeline_mode<synchronous>, transform_indices = @transform_3, window_bounds = array<i64: 3, 8, 8>}, {pipeline_mode = #tpu.pipeline_mode<synchronous>, transform_indices = @transform_4, window_bounds = array<i64: 8, 1>}, {pipeline_mode = #tpu.pipeline_mode<synchronous>, transform_indices = @transform_5, window_bounds = array<i64: 3, 8, 8>}, {pipeline_mode = #tpu.pipeline_mode<synchronous>, transform_indices = @transform_6, window_bounds = array<i64: 8, 1>}, {pipeline_mode = #tpu.pipeline_mode<synchronous>, transform_indices = @transform_7, window_bounds = array<i64: 3, 8, 4>}, {pipeline_mode = #tpu.pipeline_mode<synchronous>, transform_indices = @transform_8, window_bounds = array<i64: 8, 1>}, {transform_indices = @transform_9, window_bounds = array<i64: 2, 8, 16>}]} {
    %cst = arith.constant 0.000000e+00 : f32
    %0 = vector.broadcast %cst : f32 to vector<4x18xf32>
    %c0 = arith.constant 0 : index
    %c0_0 = arith.constant 0 : index
    %1 = vector.load %arg11[%c0, %c0_0] : memref<4x18xf32, #tpu.memory_space<vmem>>, vector<4x18xf32>
    tpu.vector_store %arg11[%c0, %c0_0], %0 {strides = array<i32>} : memref<4x18xf32, #tpu.memory_space<vmem>>, vector<4x18xf32>,
    %cst_1 = arith.constant 0.000000e+00 : f32
    %2 = vector.broadcast %cst_1 : f32 to vector<8x18xf32>
    %c0_2 = arith.constant 0 : index
    %c0_3 = arith.constant 0 : index
    %3 = vector.load %arg12[%c0_2, %c0_3] : memref<8x18xf32, #tpu.memory_space<vmem>>, vector<8x18xf32>
    tpu.vector_store %arg12[%c0_2, %c0_3], %2 {strides = array<i32>} : memref<8x18xf32, #tpu.memory_space<vmem>>, vector<8x18xf32>,
    %cst_4 = arith.constant 0.000000e+00 : f32
    %4 = vector.broadcast %cst_4 : f32 to vector<8x18xf32>
    %c0_5 = arith.constant 0 : index
    %c0_6 = arith.constant 0 : index
    %5 = vector.load %arg13[%c0_5, %c0_6] : memref<8x18xf32, #tpu.memory_space<vmem>>, vector<8x18xf32>
    tpu.vector_store %arg13[%c0_5, %c0_6], %4 {strides = array<i32>} : memref<8x18xf32, #tpu.memory_space<vmem>>, vector<8x18xf32>,
    %c0_7 = arith.constant 0 : index
    %c0_8 = arith.constant 0 : index
    %c0_9 = arith.constant 0 : index
    %6 = vector.load %arg1[%c0_7, %c0_8, %c0_9] : memref<2x4x16xf32, #tpu.memory_space<vmem>>, vector<1x4x16xf32>
    %7 = vector.shape_cast %6 : vector<1x4x16xf32> to vector<4x16xf32>
    %c0_10 = arith.constant 0 : index
    %c1 = arith.constant 1 : index
    %8 = vector.load %arg11[%c0_10, %c1] : memref<4x18xf32, #tpu.memory_space<vmem>>, vector<4x16xf32>
    tpu.vector_store %arg11[%c0_10, %c1], %7 {strides = array<i32>} : memref<4x18xf32, #tpu.memory_space<vmem>>, vector<4x16xf32>,
    %cst_11 = arith.constant 0.000000e+00 : f32
    %9 = vector.broadcast %cst_11 : f32 to vector<8x16xf32>
    %c0_12 = arith.constant 0 : index
    %c0_13 = arith.constant 0 : index
    %c0_14 = arith.constant 0 : index
    %10 = vector.load %arg2[%c0_12, %c0_13, %c0_14] : memref<3x8x4xf32, #tpu.memory_space<vmem>>, vector<1x8x4xf32>
    %11 = vector.shape_cast %10 : vector<1x8x4xf32> to vector<8x4xf32>
    %c0_15 = arith.constant 0 : index
    %c0_16 = arith.constant 0 : index
    %12 = vector.load %arg11[%c0_15, %c0_16] : memref<4x18xf32, #tpu.memory_space<vmem>>, vector<4x16xf32>
    %cst_17 = arith.constant dense<0.000000e+00> : vector<8x16xf32>
    %13 = tpu.matmul %11, %12, %cst_17 {dimension_numbers = #tpu.dot_dimension_numbers<[1], [0], [0], [1], [0, 0, 1, 1], [], []>} : vector<8x4xf32>, vector<4x16xf32>, vector<8x16xf32> -> vector<8x16xf32>
    %14 = arith.addf %9, %13 : vector<8x16xf32>
    %c1_18 = arith.constant 1 : index
    %c0_19 = arith.constant 0 : index
    %c0_20 = arith.constant 0 : index
    %15 = vector.load %arg2[%c1_18, %c0_19, %c0_20] : memref<3x8x4xf32, #tpu.memory_space<vmem>>, vector<1x8x4xf32>
    %16 = vector.shape_cast %15 : vector<1x8x4xf32> to vector<8x4xf32>
    %c0_21 = arith.constant 0 : index
    %c1_22 = arith.constant 1 : index
    %17 = vector.load %arg11[%c0_21, %c1_22] : memref<4x18xf32, #tpu.memory_space<vmem>>, vector<4x16xf32>
    %cst_23 = arith.constant dense<0.000000e+00> : vector<8x16xf32>
    %18 = tpu.matmul %16, %17, %cst_23 {dimension_numbers = #tpu.dot_dimension_numbers<[1], [0], [0], [1], [0, 0, 1, 1], [], []>} : vector<8x4xf32>, vector<4x16xf32>, vector<8x16xf32> -> vector<8x16xf32>
    %19 = arith.addf %14, %18 : vector<8x16xf32>
    %c2 = arith.constant 2 : index
    %c0_24 = arith.constant 0 : index
    %c0_25 = arith.constant 0 : index
    %20 = vector.load %arg2[%c2, %c0_24, %c0_25] : memref<3x8x4xf32, #tpu.memory_space<vmem>>, vector<1x8x4xf32>
    %21 = vector.shape_cast %20 : vector<1x8x4xf32> to vector<8x4xf32>
    %c0_26 = arith.constant 0 : index
    %c2_27 = arith.constant 2 : index
    %22 = vector.load %arg11[%c0_26, %c2_27] : memref<4x18xf32, #tpu.memory_space<vmem>>, vector<4x16xf32>
    %cst_28 = arith.constant dense<0.000000e+00> : vector<8x16xf32>
    %23 = tpu.matmul %21, %22, %cst_28 {dimension_numbers = #tpu.dot_dimension_numbers<[1], [0], [0], [1], [0, 0, 1, 1], [], []>} : vector<8x4xf32>, vector<4x16xf32>, vector<8x16xf32> -> vector<8x16xf32>
    %24 = arith.addf %19, %23 : vector<8x16xf32>
    %c0_29 = arith.constant 0 : index
    %c0_30 = arith.constant 0 : index
    %25 = vector.load %arg3[%c0_29, %c0_30] : memref<8x1xf32, #tpu.memory_space<vmem>>, vector<8x1xf32>
    %26 = vector.broadcast %25 : vector<8x1xf32> to vector<8x16xf32>
    %27 = arith.addf %24, %26 : vector<8x16xf32>
    %cst_31 = arith.constant 0.000000e+00 : f32
    %28 = vector.broadcast %cst_31 : f32 to vector<8x16xf32>
    %29 = arith.maximumf %27, %28 : vector<8x16xf32>
    %c0_32 = arith.constant 0 : index
    %c1_33 = arith.constant 1 : index
    %30 = vector.load %arg12[%c0_32, %c1_33] : memref<8x18xf32, #tpu.memory_space<vmem>>, vector<8x16xf32>
    tpu.vector_store %arg12[%c0_32, %c1_33], %29 {strides = array<i32>} : memref<8x18xf32, #tpu.memory_space<vmem>>, vector<8x16xf32>,
    %cst_34 = arith.constant 0.000000e+00 : f32
    %31 = vector.broadcast %cst_34 : f32 to vector<8x16xf32>
    %c0_35 = arith.constant 0 : index
    %c0_36 = arith.constant 0 : index
    %c0_37 = arith.constant 0 : index
    %32 = vector.load %arg4[%c0_35, %c0_36, %c0_37] : memref<3x8x8xf32, #tpu.memory_space<vmem>>, vector<1x8x8xf32>
    %33 = vector.shape_cast %32 : vector<1x8x8xf32> to vector<8x8xf32>
    %c0_38 = arith.constant 0 : index
    %c0_39 = arith.constant 0 : index
    %34 = vector.load %arg12[%c0_38, %c0_39] : memref<8x18xf32, #tpu.memory_space<vmem>>, vector<8x16xf32>
    %cst_40 = arith.constant dense<0.000000e+00> : vector<8x16xf32>
    %35 = tpu.matmul %33, %34, %cst_40 {dimension_numbers = #tpu.dot_dimension_numbers<[1], [0], [0], [1], [0, 0, 1, 1], [], []>} : vector<8x8xf32>, vector<8x16xf32>, vector<8x16xf32> -> vector<8x16xf32>
    %36 = arith.addf %31, %35 : vector<8x16xf32>
    %c1_41 = arith.constant 1 : index
    %c0_42 = arith.constant 0 : index
    %c0_43 = arith.constant 0 : index
    %37 = vector.load %arg4[%c1_41, %c0_42, %c0_43] : memref<3x8x8xf32, #tpu.memory_space<vmem>>, vector<1x8x8xf32>
    %38 = vector.shape_cast %37 : vector<1x8x8xf32> to vector<8x8xf32>
    %c0_44 = arith.constant 0 : index
    %c1_45 = arith.constant 1 : index
    %39 = vector.load %arg12[%c0_44, %c1_45] : memref<8x18xf32, #tpu.memory_space<vmem>>, vector<8x16xf32>
    %cst_46 = arith.constant dense<0.000000e+00> : vector<8x16xf32>
    %40 = tpu.matmul %38, %39, %cst_46 {dimension_numbers = #tpu.dot_dimension_numbers<[1], [0], [0], [1], [0, 0, 1, 1], [], []>} : vector<8x8xf32>, vector<8x16xf32>, vector<8x16xf32> -> vector<8x16xf32>
    %41 = arith.addf %36, %40 : vector<8x16xf32>
    %c2_47 = arith.constant 2 : index
    %c0_48 = arith.constant 0 : index
    %c0_49 = arith.constant 0 : index
    %42 = vector.load %arg4[%c2_47, %c0_48, %c0_49] : memref<3x8x8xf32, #tpu.memory_space<vmem>>, vector<1x8x8xf32>
    %43 = vector.shape_cast %42 : vector<1x8x8xf32> to vector<8x8xf32>
    %c0_50 = arith.constant 0 : index
    %c2_51 = arith.constant 2 : index
    %44 = vector.load %arg12[%c0_50, %c2_51] : memref<8x18xf32, #tpu.memory_space<vmem>>, vector<8x16xf32>
    %cst_52 = arith.constant dense<0.000000e+00> : vector<8x16xf32>
    %45 = tpu.matmul %43, %44, %cst_52 {dimension_numbers = #tpu.dot_dimension_numbers<[1], [0], [0], [1], [0, 0, 1, 1], [], []>} : vector<8x8xf32>, vector<8x16xf32>, vector<8x16xf32> -> vector<8x16xf32>
    %46 = arith.addf %41, %45 : vector<8x16xf32>
    %c0_53 = arith.constant 0 : index
    %c0_54 = arith.constant 0 : index
    %47 = vector.load %arg5[%c0_53, %c0_54] : memref<8x1xf32, #tpu.memory_space<vmem>>, vector<8x1xf32>
    %48 = vector.broadcast %47 : vector<8x1xf32> to vector<8x16xf32>
    %49 = arith.addf %46, %48 : vector<8x16xf32>
    %cst_55 = arith.constant 0.000000e+00 : f32
    %50 = vector.broadcast %cst_55 : f32 to vector<8x16xf32>
    %51 = arith.maximumf %49, %50 : vector<8x16xf32>
    %c0_56 = arith.constant 0 : index
    %c1_57 = arith.constant 1 : index
    %52 = vector.load %arg13[%c0_56, %c1_57] : memref<8x18xf32, #tpu.memory_space<vmem>>, vector<8x16xf32>
    tpu.vector_store %arg13[%c0_56, %c1_57], %51 {strides = array<i32>} : memref<8x18xf32, #tpu.memory_space<vmem>>, vector<8x16xf32>,
    %cst_58 = arith.constant 0.000000e+00 : f32
    %53 = vector.broadcast %cst_58 : f32 to vector<8x16xf32>
    %c0_59 = arith.constant 0 : index
    %c0_60 = arith.constant 0 : index
    %c0_61 = arith.constant 0 : index
    %54 = vector.load %arg6[%c0_59, %c0_60, %c0_61] : memref<3x8x8xf32, #tpu.memory_space<vmem>>, vector<1x8x8xf32>
    %55 = vector.shape_cast %54 : vector<1x8x8xf32> to vector<8x8xf32>
    %c0_62 = arith.constant 0 : index
    %c0_63 = arith.constant 0 : index
    %56 = vector.load %arg13[%c0_62, %c0_63] : memref<8x18xf32, #tpu.memory_space<vmem>>, vector<8x16xf32>
    %cst_64 = arith.constant dense<0.000000e+00> : vector<8x16xf32>
    %57 = tpu.matmul %55, %56, %cst_64 {dimension_numbers = #tpu.dot_dimension_numbers<[1], [0], [0], [1], [0, 0, 1, 1], [], []>} : vector<8x8xf32>, vector<8x16xf32>, vector<8x16xf32> -> vector<8x16xf32>
    %58 = arith.addf %53, %57 : vector<8x16xf32>
    %c1_65 = arith.constant 1 : index
    %c0_66 = arith.constant 0 : index
    %c0_67 = arith.constant 0 : index
    %59 = vector.load %arg6[%c1_65, %c0_66, %c0_67] : memref<3x8x8xf32, #tpu.memory_space<vmem>>, vector<1x8x8xf32>
    %60 = vector.shape_cast %59 : vector<1x8x8xf32> to vector<8x8xf32>
    %c0_68 = arith.constant 0 : index
    %c1_69 = arith.constant 1 : index
    %61 = vector.load %arg13[%c0_68, %c1_69] : memref<8x18xf32, #tpu.memory_space<vmem>>, vector<8x16xf32>
    %cst_70 = arith.constant dense<0.000000e+00> : vector<8x16xf32>
    %62 = tpu.matmul %60, %61, %cst_70 {dimension_numbers = #tpu.dot_dimension_numbers<[1], [0], [0], [1], [0, 0, 1, 1], [], []>} : vector<8x8xf32>, vector<8x16xf32>, vector<8x16xf32> -> vector<8x16xf32>
    %63 = arith.addf %58, %62 : vector<8x16xf32>
    %c2_71 = arith.constant 2 : index
    %c0_72 = arith.constant 0 : index
    %c0_73 = arith.constant 0 : index
    %64 = vector.load %arg6[%c2_71, %c0_72, %c0_73] : memref<3x8x8xf32, #tpu.memory_space<vmem>>, vector<1x8x8xf32>
    %65 = vector.shape_cast %64 : vector<1x8x8xf32> to vector<8x8xf32>
    %c0_74 = arith.constant 0 : index
    %c2_75 = arith.constant 2 : index
    %66 = vector.load %arg13[%c0_74, %c2_75] : memref<8x18xf32, #tpu.memory_space<vmem>>, vector<8x16xf32>
    %cst_76 = arith.constant dense<0.000000e+00> : vector<8x16xf32>
    %67 = tpu.matmul %65, %66, %cst_76 {dimension_numbers = #tpu.dot_dimension_numbers<[1], [0], [0], [1], [0, 0, 1, 1], [], []>} : vector<8x8xf32>, vector<8x16xf32>, vector<8x16xf32> -> vector<8x16xf32>
    %68 = arith.addf %63, %67 : vector<8x16xf32>
    %c0_77 = arith.constant 0 : index
    %c0_78 = arith.constant 0 : index
    %69 = vector.load %arg7[%c0_77, %c0_78] : memref<8x1xf32, #tpu.memory_space<vmem>>, vector<8x1xf32>
    %70 = vector.broadcast %69 : vector<8x1xf32> to vector<8x16xf32>
    %71 = arith.addf %68, %70 : vector<8x16xf32>
    %cst_79 = arith.constant 0.000000e+00 : f32
    %72 = vector.broadcast %cst_79 : f32 to vector<8x16xf32>
    %73 = arith.maximumf %71, %72 : vector<8x16xf32>
    %cst_80 = arith.constant 0.000000e+00 : f32
    %74 = vector.broadcast %cst_80 : f32 to vector<8x16xf32>
    %c0_81 = arith.constant 0 : index
    %c0_82 = arith.constant 0 : index
    %c0_83 = arith.constant 0 : index
    %75 = vector.load %arg8[%c0_81, %c0_82, %c0_83] : memref<3x8x4xf32, #tpu.memory_space<vmem>>, vector<1x8x4xf32>
    %76 = vector.shape_cast %75 : vector<1x8x4xf32> to vector<8x4xf32>
    %c0_84 = arith.constant 0 : index
    %c0_85 = arith.constant 0 : index
    %77 = vector.load %arg11[%c0_84, %c0_85] : memref<4x18xf32, #tpu.memory_space<vmem>>, vector<4x16xf32>
    %cst_86 = arith.constant dense<0.000000e+00> : vector<8x16xf32>
    %78 = tpu.matmul %76, %77, %cst_86 {dimension_numbers = #tpu.dot_dimension_numbers<[1], [0], [0], [1], [0, 0, 1, 1], [], []>} : vector<8x4xf32>, vector<4x16xf32>, vector<8x16xf32> -> vector<8x16xf32>
    %79 = arith.addf %74, %78 : vector<8x16xf32>
    %c1_87 = arith.constant 1 : index
    %c0_88 = arith.constant 0 : index
    %c0_89 = arith.constant 0 : index
    %80 = vector.load %arg8[%c1_87, %c0_88, %c0_89] : memref<3x8x4xf32, #tpu.memory_space<vmem>>, vector<1x8x4xf32>
    %81 = vector.shape_cast %80 : vector<1x8x4xf32> to vector<8x4xf32>
    %c0_90 = arith.constant 0 : index
    %c1_91 = arith.constant 1 : index
    %82 = vector.load %arg11[%c0_90, %c1_91] : memref<4x18xf32, #tpu.memory_space<vmem>>, vector<4x16xf32>
    %cst_92 = arith.constant dense<0.000000e+00> : vector<8x16xf32>
    %83 = tpu.matmul %81, %82, %cst_92 {dimension_numbers = #tpu.dot_dimension_numbers<[1], [0], [0], [1], [0, 0, 1, 1], [], []>} : vector<8x4xf32>, vector<4x16xf32>, vector<8x16xf32> -> vector<8x16xf32>
    %84 = arith.addf %79, %83 : vector<8x16xf32>
    %c2_93 = arith.constant 2 : index
    %c0_94 = arith.constant 0 : index
    %c0_95 = arith.constant 0 : index
    %85 = vector.load %arg8[%c2_93, %c0_94, %c0_95] : memref<3x8x4xf32, #tpu.memory_space<vmem>>, vector<1x8x4xf32>
    %86 = vector.shape_cast %85 : vector<1x8x4xf32> to vector<8x4xf32>
    %c0_96 = arith.constant 0 : index
    %c2_97 = arith.constant 2 : index
    %87 = vector.load %arg11[%c0_96, %c2_97] : memref<4x18xf32, #tpu.memory_space<vmem>>, vector<4x16xf32>
    %cst_98 = arith.constant dense<0.000000e+00> : vector<8x16xf32>
    %88 = tpu.matmul %86, %87, %cst_98 {dimension_numbers = #tpu.dot_dimension_numbers<[1], [0], [0], [1], [0, 0, 1, 1], [], []>} : vector<8x4xf32>, vector<4x16xf32>, vector<8x16xf32> -> vector<8x16xf32>
    %89 = arith.addf %84, %88 : vector<8x16xf32>
    %c0_99 = arith.constant 0 : index
    %c0_100 = arith.constant 0 : index
    %90 = vector.load %arg9[%c0_99, %c0_100] : memref<8x1xf32, #tpu.memory_space<vmem>>, vector<8x1xf32>
    %91 = vector.broadcast %90 : vector<8x1xf32> to vector<8x16xf32>
    %92 = arith.addf %89, %91 : vector<8x16xf32>
    %93 = arith.addf %73, %92 : vector<8x16xf32>
    %cst_101 = arith.constant 0.000000e+00 : f32
    %94 = vector.broadcast %cst_101 : f32 to vector<8x16xf32>
    %95 = arith.maximumf %93, %94 : vector<8x16xf32>
    %c0_102 = arith.constant 0 : index
    %c0_103 = arith.constant 0 : index
    %c0_104 = arith.constant 0 : index
    %96 = vector.load %arg10[%c0_102, %c0_103, %c0_104] : memref<2x8x16xf32, #tpu.memory_space<vmem>>, vector<1x8x16xf32>
    %97 = vector.shape_cast %96 : vector<1x8x16xf32> to vector<8x16xf32>
    %98 = vector.shape_cast %95 : vector<8x16xf32> to vector<1x8x16xf32>
    tpu.vector_store %arg10[%c0_102, %c0_103, %c0_104], %98 {strides = array<i32>} : memref<2x8x16xf32, #tpu.memory_space<vmem>>, vector<1x8x16xf32>,
    %c1_105 = arith.constant 1 : index
    %c0_106 = arith.constant 0 : index
    %c0_107 = arith.constant 0 : index
    %99 = vector.load %arg1[%c1_105, %c0_106, %c0_107] : memref<2x4x16xf32, #tpu.memory_space<vmem>>, vector<1x4x16xf32>
    %100 = vector.shape_cast %99 : vector<1x4x16xf32> to vector<4x16xf32>
    %c0_108 = arith.constant 0 : index
    %c1_109 = arith.constant 1 : index
    %101 = vector.load %arg11[%c0_108, %c1_109] : memref<4x18xf32, #tpu.memory_space<vmem>>, vector<4x16xf32>
    tpu.vector_store %arg11[%c0_108, %c1_109], %100 {strides = array<i32>} : memref<4x18xf32, #tpu.memory_space<vmem>>, vector<4x16xf32>,
    %cst_110 = arith.constant 0.000000e+00 : f32
    %102 = vector.broadcast %cst_110 : f32 to vector<8x16xf32>
    %c0_111 = arith.constant 0 : index
    %c0_112 = arith.constant 0 : index
    %c0_113 = arith.constant 0 : index
    %103 = vector.load %arg2[%c0_111, %c0_112, %c0_113] : memref<3x8x4xf32, #tpu.memory_space<vmem>>, vector<1x8x4xf32>
    %104 = vector.shape_cast %103 : vector<1x8x4xf32> to vector<8x4xf32>
    %c0_114 = arith.constant 0 : index
    %c0_115 = arith.constant 0 : index
    %105 = vector.load %arg11[%c0_114, %c0_115] : memref<4x18xf32, #tpu.memory_space<vmem>>, vector<4x16xf32>
    %cst_116 = arith.constant dense<0.000000e+00> : vector<8x16xf32>
    %106 = tpu.matmul %104, %105, %cst_116 {dimension_numbers = #tpu.dot_dimension_numbers<[1], [0], [0], [1], [0, 0, 1, 1], [], []>} : vector<8x4xf32>, vector<4x16xf32>, vector<8x16xf32> -> vector<8x16xf32>
    %107 = arith.addf %102, %106 : vector<8x16xf32>
    %c1_117 = arith.constant 1 : index
    %c0_118 = arith.constant 0 : index
    %c0_119 = arith.constant 0 : index
    %108 = vector.load %arg2[%c1_117, %c0_118, %c0_119] : memref<3x8x4xf32, #tpu.memory_space<vmem>>, vector<1x8x4xf32>
    %109 = vector.shape_cast %108 : vector<1x8x4xf32> to vector<8x4xf32>
    %c0_120 = arith.constant 0 : index
    %c1_121 = arith.constant 1 : index
    %110 = vector.load %arg11[%c0_120, %c1_121] : memref<4x18xf32, #tpu.memory_space<vmem>>, vector<4x16xf32>
    %cst_122 = arith.constant dense<0.000000e+00> : vector<8x16xf32>
    %111 = tpu.matmul %109, %110, %cst_122 {dimension_numbers = #tpu.dot_dimension_numbers<[1], [0], [0], [1], [0, 0, 1, 1], [], []>} : vector<8x4xf32>, vector<4x16xf32>, vector<8x16xf32> -> vector<8x16xf32>
    %112 = arith.addf %107, %111 : vector<8x16xf32>
    %c2_123 = arith.constant 2 : index
    %c0_124 = arith.constant 0 : index
    %c0_125 = arith.constant 0 : index
    %113 = vector.load %arg2[%c2_123, %c0_124, %c0_125] : memref<3x8x4xf32, #tpu.memory_space<vmem>>, vector<1x8x4xf32>
    %114 = vector.shape_cast %113 : vector<1x8x4xf32> to vector<8x4xf32>
    %c0_126 = arith.constant 0 : index
    %c2_127 = arith.constant 2 : index
    %115 = vector.load %arg11[%c0_126, %c2_127] : memref<4x18xf32, #tpu.memory_space<vmem>>, vector<4x16xf32>
    %cst_128 = arith.constant dense<0.000000e+00> : vector<8x16xf32>
    %116 = tpu.matmul %114, %115, %cst_128 {dimension_numbers = #tpu.dot_dimension_numbers<[1], [0], [0], [1], [0, 0, 1, 1], [], []>} : vector<8x4xf32>, vector<4x16xf32>, vector<8x16xf32> -> vector<8x16xf32>
    %117 = arith.addf %112, %116 : vector<8x16xf32>
    %c0_129 = arith.constant 0 : index
    %c0_130 = arith.constant 0 : index
    %118 = vector.load %arg3[%c0_129, %c0_130] : memref<8x1xf32, #tpu.memory_space<vmem>>, vector<8x1xf32>
    %119 = vector.broadcast %118 : vector<8x1xf32> to vector<8x16xf32>
    %120 = arith.addf %117, %119 : vector<8x16xf32>
    %cst_131 = arith.constant 0.000000e+00 : f32
    %121 = vector.broadcast %cst_131 : f32 to vector<8x16xf32>
    %122 = arith.maximumf %120, %121 : vector<8x16xf32>
    %c0_132 = arith.constant 0 : index
    %c1_133 = arith.constant 1 : index
    %123 = vector.load %arg12[%c0_132, %c1_133] : memref<8x18xf32, #tpu.memory_space<vmem>>, vector<8x16xf32>
    tpu.vector_store %arg12[%c0_132, %c1_133], %122 {strides = array<i32>} : memref<8x18xf32, #tpu.memory_space<vmem>>, vector<8x16xf32>,
    %cst_134 = arith.constant 0.000000e+00 : f32
    %124 = vector.broadcast %cst_134 : f32 to vector<8x16xf32>
    %c0_135 = arith.constant 0 : index
    %c0_136 = arith.constant 0 : index
    %c0_137 = arith.constant 0 : index
    %125 = vector.load %arg4[%c0_135, %c0_136, %c0_137] : memref<3x8x8xf32, #tpu.memory_space<vmem>>, vector<1x8x8xf32>
    %126 = vector.shape_cast %125 : vector<1x8x8xf32> to vector<8x8xf32>
    %c0_138 = arith.constant 0 : index
    %c0_139 = arith.constant 0 : index
    %127 = vector.load %arg12[%c0_138, %c0_139] : memref<8x18xf32, #tpu.memory_space<vmem>>, vector<8x16xf32>
    %cst_140 = arith.constant dense<0.000000e+00> : vector<8x16xf32>
    %128 = tpu.matmul %126, %127, %cst_140 {dimension_numbers = #tpu.dot_dimension_numbers<[1], [0], [0], [1], [0, 0, 1, 1], [], []>} : vector<8x8xf32>, vector<8x16xf32>, vector<8x16xf32> -> vector<8x16xf32>
    %129 = arith.addf %124, %128 : vector<8x16xf32>
    %c1_141 = arith.constant 1 : index
    %c0_142 = arith.constant 0 : index
    %c0_143 = arith.constant 0 : index
    %130 = vector.load %arg4[%c1_141, %c0_142, %c0_143] : memref<3x8x8xf32, #tpu.memory_space<vmem>>, vector<1x8x8xf32>
    %131 = vector.shape_cast %130 : vector<1x8x8xf32> to vector<8x8xf32>
    %c0_144 = arith.constant 0 : index
    %c1_145 = arith.constant 1 : index
    %132 = vector.load %arg12[%c0_144, %c1_145] : memref<8x18xf32, #tpu.memory_space<vmem>>, vector<8x16xf32>
    %cst_146 = arith.constant dense<0.000000e+00> : vector<8x16xf32>
    %133 = tpu.matmul %131, %132, %cst_146 {dimension_numbers = #tpu.dot_dimension_numbers<[1], [0], [0], [1], [0, 0, 1, 1], [], []>} : vector<8x8xf32>, vector<8x16xf32>, vector<8x16xf32> -> vector<8x16xf32>
    %134 = arith.addf %129, %133 : vector<8x16xf32>
    %c2_147 = arith.constant 2 : index
    %c0_148 = arith.constant 0 : index
    %c0_149 = arith.constant 0 : index
    %135 = vector.load %arg4[%c2_147, %c0_148, %c0_149] : memref<3x8x8xf32, #tpu.memory_space<vmem>>, vector<1x8x8xf32>
    %136 = vector.shape_cast %135 : vector<1x8x8xf32> to vector<8x8xf32>
    %c0_150 = arith.constant 0 : index
    %c2_151 = arith.constant 2 : index
    %137 = vector.load %arg12[%c0_150, %c2_151] : memref<8x18xf32, #tpu.memory_space<vmem>>, vector<8x16xf32>
    %cst_152 = arith.constant dense<0.000000e+00> : vector<8x16xf32>
    %138 = tpu.matmul %136, %137, %cst_152 {dimension_numbers = #tpu.dot_dimension_numbers<[1], [0], [0], [1], [0, 0, 1, 1], [], []>} : vector<8x8xf32>, vector<8x16xf32>, vector<8x16xf32> -> vector<8x16xf32>
    %139 = arith.addf %134, %138 : vector<8x16xf32>
    %c0_153 = arith.constant 0 : index
    %c0_154 = arith.constant 0 : index
    %140 = vector.load %arg5[%c0_153, %c0_154] : memref<8x1xf32, #tpu.memory_space<vmem>>, vector<8x1xf32>
    %141 = vector.broadcast %140 : vector<8x1xf32> to vector<8x16xf32>
    %142 = arith.addf %139, %141 : vector<8x16xf32>
    %cst_155 = arith.constant 0.000000e+00 : f32
    %143 = vector.broadcast %cst_155 : f32 to vector<8x16xf32>
    %144 = arith.maximumf %142, %143 : vector<8x16xf32>
    %c0_156 = arith.constant 0 : index
    %c1_157 = arith.constant 1 : index
    %145 = vector.load %arg13[%c0_156, %c1_157] : memref<8x18xf32, #tpu.memory_space<vmem>>, vector<8x16xf32>
    tpu.vector_store %arg13[%c0_156, %c1_157], %144 {strides = array<i32>} : memref<8x18xf32, #tpu.memory_space<vmem>>, vector<8x16xf32>,
    %cst_158 = arith.constant 0.000000e+00 : f32
    %146 = vector.broadcast %cst_158 : f32 to vector<8x16xf32>
    %c0_159 = arith.constant 0 : index
    %c0_160 = arith.constant 0 : index
    %c0_161 = arith.constant 0 : index
    %147 = vector.load %arg6[%c0_159, %c0_160, %c0_161] : memref<3x8x8xf32, #tpu.memory_space<vmem>>, vector<1x8x8xf32>
    %148 = vector.shape_cast %147 : vector<1x8x8xf32> to vector<8x8xf32>
    %c0_162 = arith.constant 0 : index
    %c0_163 = arith.constant 0 : index
    %149 = vector.load %arg13[%c0_162, %c0_163] : memref<8x18xf32, #tpu.memory_space<vmem>>, vector<8x16xf32>
    %cst_164 = arith.constant dense<0.000000e+00> : vector<8x16xf32>
    %150 = tpu.matmul %148, %149, %cst_164 {dimension_numbers = #tpu.dot_dimension_numbers<[1], [0], [0], [1], [0, 0, 1, 1], [], []>} : vector<8x8xf32>, vector<8x16xf32>, vector<8x16xf32> -> vector<8x16xf32>
    %151 = arith.addf %146, %150 : vector<8x16xf32>
    %c1_165 = arith.constant 1 : index
    %c0_166 = arith.constant 0 : index
    %c0_167 = arith.constant 0 : index
    %152 = vector.load %arg6[%c1_165, %c0_166, %c0_167] : memref<3x8x8xf32, #tpu.memory_space<vmem>>, vector<1x8x8xf32>
    %153 = vector.shape_cast %152 : vector<1x8x8xf32> to vector<8x8xf32>
    %c0_168 = arith.constant 0 : index
    %c1_169 = arith.constant 1 : index
    %154 = vector.load %arg13[%c0_168, %c1_169] : memref<8x18xf32, #tpu.memory_space<vmem>>, vector<8x16xf32>
    %cst_170 = arith.constant dense<0.000000e+00> : vector<8x16xf32>
    %155 = tpu.matmul %153, %154, %cst_170 {dimension_numbers = #tpu.dot_dimension_numbers<[1], [0], [0], [1], [0, 0, 1, 1], [], []>} : vector<8x8xf32>, vector<8x16xf32>, vector<8x16xf32> -> vector<8x16xf32>
    %156 = arith.addf %151, %155 : vector<8x16xf32>
    %c2_171 = arith.constant 2 : index
    %c0_172 = arith.constant 0 : index
    %c0_173 = arith.constant 0 : index
    %157 = vector.load %arg6[%c2_171, %c0_172, %c0_173] : memref<3x8x8xf32, #tpu.memory_space<vmem>>, vector<1x8x8xf32>
    %158 = vector.shape_cast %157 : vector<1x8x8xf32> to vector<8x8xf32>
    %c0_174 = arith.constant 0 : index
    %c2_175 = arith.constant 2 : index
    %159 = vector.load %arg13[%c0_174, %c2_175] : memref<8x18xf32, #tpu.memory_space<vmem>>, vector<8x16xf32>
    %cst_176 = arith.constant dense<0.000000e+00> : vector<8x16xf32>
    %160 = tpu.matmul %158, %159, %cst_176 {dimension_numbers = #tpu.dot_dimension_numbers<[1], [0], [0], [1], [0, 0, 1, 1], [], []>} : vector<8x8xf32>, vector<8x16xf32>, vector<8x16xf32> -> vector<8x16xf32>
    %161 = arith.addf %156, %160 : vector<8x16xf32>
    %c0_177 = arith.constant 0 : index
    %c0_178 = arith.constant 0 : index
    %162 = vector.load %arg7[%c0_177, %c0_178] : memref<8x1xf32, #tpu.memory_space<vmem>>, vector<8x1xf32>
    %163 = vector.broadcast %162 : vector<8x1xf32> to vector<8x16xf32>
    %164 = arith.addf %161, %163 : vector<8x16xf32>
    %cst_179 = arith.constant 0.000000e+00 : f32
    %165 = vector.broadcast %cst_179 : f32 to vector<8x16xf32>
    %166 = arith.maximumf %164, %165 : vector<8x16xf32>
    %cst_180 = arith.constant 0.000000e+00 : f32
    %167 = vector.broadcast %cst_180 : f32 to vector<8x16xf32>
    %c0_181 = arith.constant 0 : index
    %c0_182 = arith.constant 0 : index
    %c0_183 = arith.constant 0 : index
    %168 = vector.load %arg8[%c0_181, %c0_182, %c0_183] : memref<3x8x4xf32, #tpu.memory_space<vmem>>, vector<1x8x4xf32>
    %169 = vector.shape_cast %168 : vector<1x8x4xf32> to vector<8x4xf32>
    %c0_184 = arith.constant 0 : index
    %c0_185 = arith.constant 0 : index
    %170 = vector.load %arg11[%c0_184, %c0_185] : memref<4x18xf32, #tpu.memory_space<vmem>>, vector<4x16xf32>
    %cst_186 = arith.constant dense<0.000000e+00> : vector<8x16xf32>
    %171 = tpu.matmul %169, %170, %cst_186 {dimension_numbers = #tpu.dot_dimension_numbers<[1], [0], [0], [1], [0, 0, 1, 1], [], []>} : vector<8x4xf32>, vector<4x16xf32>, vector<8x16xf32> -> vector<8x16xf32>
    %172 = arith.addf %167, %171 : vector<8x16xf32>
    %c1_187 = arith.constant 1 : index
    %c0_188 = arith.constant 0 : index
    %c0_189 = arith.constant 0 : index
    %173 = vector.load %arg8[%c1_187, %c0_188, %c0_189] : memref<3x8x4xf32, #tpu.memory_space<vmem>>, vector<1x8x4xf32>
    %174 = vector.shape_cast %173 : vector<1x8x4xf32> to vector<8x4xf32>
    %c0_190 = arith.constant 0 : index
    %c1_191 = arith.constant 1 : index
    %175 = vector.load %arg11[%c0_190, %c1_191] : memref<4x18xf32, #tpu.memory_space<vmem>>, vector<4x16xf32>
    %cst_192 = arith.constant dense<0.000000e+00> : vector<8x16xf32>
    %176 = tpu.matmul %174, %175, %cst_192 {dimension_numbers = #tpu.dot_dimension_numbers<[1], [0], [0], [1], [0, 0, 1, 1], [], []>} : vector<8x4xf32>, vector<4x16xf32>, vector<8x16xf32> -> vector<8x16xf32>
    %177 = arith.addf %172, %176 : vector<8x16xf32>
    %c2_193 = arith.constant 2 : index
    %c0_194 = arith.constant 0 : index
    %c0_195 = arith.constant 0 : index
    %178 = vector.load %arg8[%c2_193, %c0_194, %c0_195] : memref<3x8x4xf32, #tpu.memory_space<vmem>>, vector<1x8x4xf32>
    %179 = vector.shape_cast %178 : vector<1x8x4xf32> to vector<8x4xf32>
    %c0_196 = arith.constant 0 : index
    %c2_197 = arith.constant 2 : index
    %180 = vector.load %arg11[%c0_196, %c2_197] : memref<4x18xf32, #tpu.memory_space<vmem>>, vector<4x16xf32>
    %cst_198 = arith.constant dense<0.000000e+00> : vector<8x16xf32>
    %181 = tpu.matmul %179, %180, %cst_198 {dimension_numbers = #tpu.dot_dimension_numbers<[1], [0], [0], [1], [0, 0, 1, 1], [], []>} : vector<8x4xf32>, vector<4x16xf32>, vector<8x16xf32> -> vector<8x16xf32>
    %182 = arith.addf %177, %181 : vector<8x16xf32>
    %c0_199 = arith.constant 0 : index
    %c0_200 = arith.constant 0 : index
    %183 = vector.load %arg9[%c0_199, %c0_200] : memref<8x1xf32, #tpu.memory_space<vmem>>, vector<8x1xf32>
    %184 = vector.broadcast %183 : vector<8x1xf32> to vector<8x16xf32>
    %185 = arith.addf %182, %184 : vector<8x16xf32>
    %186 = arith.addf %166, %185 : vector<8x16xf32>
    %cst_201 = arith.constant 0.000000e+00 : f32
    %187 = vector.broadcast %cst_201 : f32 to vector<8x16xf32>
    %188 = arith.maximumf %186, %187 : vector<8x16xf32>
    %c1_202 = arith.constant 1 : index
    %c0_203 = arith.constant 0 : index
    %c0_204 = arith.constant 0 : index
    %189 = vector.load %arg10[%c1_202, %c0_203, %c0_204] : memref<2x8x16xf32, #tpu.memory_space<vmem>>, vector<1x8x16xf32>
    %190 = vector.shape_cast %189 : vector<1x8x16xf32> to vector<8x16xf32>
    %191 = vector.shape_cast %188 : vector<8x16xf32> to vector<1x8x16xf32>
    tpu.vector_store %arg10[%c1_202, %c0_203, %c0_204], %191 {strides = array<i32>} : memref<2x8x16xf32, #tpu.memory_space<vmem>>, vector<1x8x16xf32>,
    return
  }
  func.func @transform_0(%arg0: i32) -> (i32, i32, i32) {
    %c0_i32 = arith.constant 0 : i32
    %c0_i32_0 = arith.constant 0 : i32
    %c0_i32_1 = arith.constant 0 : i32
    return %arg0, %c0_i32, %c0_i32_0 : i32, i32, i32
  }
  func.func @transform_1(%arg0: i32) -> (i32, i32, i32) {
    %c0_i32 = arith.constant 0 : i32
    %c0_i32_0 = arith.constant 0 : i32
    %c0_i32_1 = arith.constant 0 : i32
    %c0_i32_2 = arith.constant 0 : i32
    return %c0_i32, %c0_i32_0, %c0_i32_1 : i32, i32, i32
  }
  func.func @transform_2(%arg0: i32) -> (i32, i32) {
    %c0_i32 = arith.constant 0 : i32
    %c0_i32_0 = arith.constant 0 : i32
    %c0_i32_1 = arith.constant 0 : i32
    return %c0_i32, %c0_i32_0 : i32, i32
  }
  func.func @transform_3(%arg0: i32) -> (i32, i32, i32) {
    %c0_i32 = arith.constant 0 : i32
    %c0_i32_0 = arith.constant 0 : i32
    %c0_i32_1 = arith.constant 0 : i32
    %c0_i32_2 = arith.constant 0 : i32
    return %c0_i32, %c0_i32_0, %c0_i32_1 : i32, i32, i32
  }
  func.func @transform_4(%arg0: i32) -> (i32, i32) {
    %c0_i32 = arith.constant 0 : i32
    %c0_i32_0 = arith.constant 0 : i32
    %c0_i32_1 = arith.constant 0 : i32
    return %c0_i32, %c0_i32_0 : i32, i32
  }
  func.func @transform_5(%arg0: i32) -> (i32, i32, i32) {
    %c0_i32 = arith.constant 0 : i32
    %c0_i32_0 = arith.constant 0 : i32
    %c0_i32_1 = arith.constant 0 : i32
    %c0_i32_2 = arith.constant 0 : i32
    return %c0_i32, %c0_i32_0, %c0_i32_1 : i32, i32, i32
  }
  func.func @transform_6(%arg0: i32) -> (i32, i32) {
    %c0_i32 = arith.constant 0 : i32
    %c0_i32_0 = arith.constant 0 : i32
    %c0_i32_1 = arith.constant 0 : i32
    return %c0_i32, %c0_i32_0 : i32, i32
  }
  func.func @transform_7(%arg0: i32) -> (i32, i32, i32) {
    %c0_i32 = arith.constant 0 : i32
    %c0_i32_0 = arith.constant 0 : i32
    %c0_i32_1 = arith.constant 0 : i32
    %c0_i32_2 = arith.constant 0 : i32
    return %c0_i32, %c0_i32_0, %c0_i32_1 : i32, i32, i32
  }
  func.func @transform_8(%arg0: i32) -> (i32, i32) {
    %c0_i32 = arith.constant 0 : i32
    %c0_i32_0 = arith.constant 0 : i32
    %c0_i32_1 = arith.constant 0 : i32
    return %c0_i32, %c0_i32_0 : i32, i32
  }
  func.func @transform_9(%arg0: i32) -> (i32, i32, i32) {
    %c0_i32 = arith.constant 0 : i32
    %c0_i32_0 = arith.constant 0 : i32
    %c0_i32_1 = arith.constant 0 : i32
    return %arg0, %c0_i32, %c0_i32_0 : i32, i32, i32
  }
}

</mosaic_0001>

<llo_original>
// kernel: convolution_block_pallas.1
$region0: #{convolution_block_pallas.1}
  #allocation0 [shape = 'u32[]', space=smem, size = 0x4, offset = 0x4, fixed_abs, tag = 'smem constant byte address 0x4 - core index']
  #allocation1 [shape = 'u32[72,128]{1,0:T(1,128)}', space=vmem, size = 0x9000, scoped, tag = 'internal scratch']
  #allocation2 [shape = 'f32[4,18]{1,0:T(4,128)}', space=vmem, size = 0x800, scoped, tag = 'scratch operand']
  #allocation3 [shape = 'f32[8,18]{1,0:T(8,128)}', space=vmem, size = 0x1000, scoped, tag = 'scratch operand']
  #allocation4 [shape = 'f32[8,18]{1,0:T(8,128)}', space=vmem, size = 0x1000, scoped, tag = 'scratch operand']
  %s0 = inlined_call_operand.vmem [shape: f32[2,4,16], index: 0, kind: input, shape index: {}]
  %s1 = inlined_call_operand.vmem [shape: f32[3,8,4], index: 1, kind: input, shape index: {}]
  %s2 = inlined_call_operand.vmem [shape: f32[8,1], index: 2, kind: input, shape index: {}]
  %s3 = inlined_call_operand.vmem [shape: f32[3,8,8], index: 3, kind: input, shape index: {}]
  %s4 = inlined_call_operand.vmem [shape: f32[8,1], index: 4, kind: input, shape index: {}]
  %s5 = inlined_call_operand.vmem [shape: f32[3,8,8], index: 5, kind: input, shape index: {}]
  %s6 = inlined_call_operand.vmem [shape: f32[8,1], index: 6, kind: input, shape index: {}]
  %s7 = inlined_call_operand.vmem [shape: f32[3,8,4], index: 7, kind: input, shape index: {}]
  %s8 = inlined_call_operand.vmem [shape: f32[8,1], index: 8, kind: input, shape index: {}]
  %s9 = inlined_call_operand.hbm [shape: f32[2,8,16], index: 9, kind: output, shape index: {}]
  %s10 = sld [smem:[#allocation0]]
  $region46: #{convolution_block_pallas.1} parent=0
    _
  %s12 = ssub.s32 1, %s10
  %s13 = scalar_select 0, %s12, %s10
  $region1: #{convolution_block_pallas.1} parent=0
    #allocation5 [shape = 'u8[8192]{0}', space=vmem, size = 0x2000, scoped, tag = 'output window, operand 0, single buffered']
    #allocation6 [shape = 's32[1]{0}', space=sflag, size = 0x4, scoped, tag = 'scoped memory for convolution_block_pallas.1']
    %14 = vsyncpa [#allocation6], 0
    // Predicated region
    $region2: #{convolution_block_pallas.1} parent=1 // pred_check
      _
    $region3: #{convolution_block_pallas.1} parent=1 // pred_check_branch
      %16 = sbr.rel (0) target = $region5
    $region4: #{convolution_block_pallas.1} parent=1 // pred_region
      _
    $region5: #{convolution_block_pallas.1} parent=1 // pred_fallthru
      _
    // Predicated region
    $region6: #{convolution_block_pallas.1} parent=1 // pred_check
      _
    $region7: #{convolution_block_pallas.1} parent=1 // pred_check_branch
      %18 = sbr.rel (0) target = $region9
    $region8: #{convolution_block_pallas.1} parent=1 // pred_region
      _
    $region9: #{convolution_block_pallas.1} parent=1 // pred_fallthru
      _
    // Predicated region
    $region10: #{convolution_block_pallas.1} parent=1 // pred_check
      _
    $region11: #{convolution_block_pallas.1} parent=1 // pred_check_branch
      %20 = sbr.rel (0) target = $region13
    $region12: #{convolution_block_pallas.1} parent=1 // pred_region
      _
    $region13: #{convolution_block_pallas.1} parent=1 // pred_fallthru
      _
    // Predicated region
    $region14: #{convolution_block_pallas.1} parent=1 // pred_check
      _
    $region15: #{convolution_block_pallas.1} parent=1 // pred_check_branch
      %22 = sbr.rel (0) target = $region17
    $region16: #{convolution_block_pallas.1} parent=1 // pred_region
      _
    $region17: #{convolution_block_pallas.1} parent=1 // pred_fallthru
      _
    // Predicated region
    $region18: #{convolution_block_pallas.1} parent=1 // pred_check
      _
    $region19: #{convolution_block_pallas.1} parent=1 // pred_check_branch
      %24 = sbr.rel (0) target = $region21
    $region20: #{convolution_block_pallas.1} parent=1 // pred_region
      _
    $region21: #{convolution_block_pallas.1} parent=1 // pred_fallthru
      _
    // Predicated region
    $region22: #{convolution_block_pallas.1} parent=1 // pred_check
      _
    $region23: #{convolution_block_pallas.1} parent=1 // pred_check_branch
      %26 = sbr.rel (0) target = $region25
    $region24: #{convolution_block_pallas.1} parent=1 // pred_region
      _
    $region25: #{convolution_block_pallas.1} parent=1 // pred_fallthru
      _
    // Predicated region
    $region26: #{convolution_block_pallas.1} parent=1 // pred_check
      _
    $region27: #{convolution_block_pallas.1} parent=1 // pred_check_branch
      %28 = sbr.rel (0) target = $region29
    $region28: #{convolution_block_pallas.1} parent=1 // pred_region
      _
    $region29: #{convolution_block_pallas.1} parent=1 // pred_fallthru
      _
    // Predicated region
    $region30: #{convolution_block_pallas.1} parent=1 // pred_check
      _
    $region31: #{convolution_block_pallas.1} parent=1 // pred_check_branch
      %30 = sbr.rel (0) target = $region33
    $region32: #{convolution_block_pallas.1} parent=1 // pred_region
      _
    $region33: #{convolution_block_pallas.1} parent=1 // pred_fallthru
      _
    // Predicated region
    $region34: #{convolution_block_pallas.1} parent=1 // pred_check
      _
    $region35: #{convolution_block_pallas.1} parent=1 // pred_check_branch
      %32 = sbr.rel (0) target = $region37
    $region36: #{convolution_block_pallas.1} parent=1 // pred_region
      _
    $region37: #{convolution_block_pallas.1} parent=1 // pred_fallthru
      _
    %vm33 = vcmask 142336
    %34 = vst.msk [vmem:[#allocation2] sm:$0xf] %vm33, 0.0
    %vm35 = vcmask 146432
    %36 = vst.msk [vmem:[#allocation3] sm:$0xff] %vm35, 0.0
    %37 = vst.msk [vmem:[#allocation4] sm:$0xff] %vm35, 0.0
    %v38 = vld [vmem:[%s0] sm:$0xf]
    %40 = vrot.lane.b32.xlu0 %v38, 1
    %v41 = vpop.permute.xlu0 %40
    %vm43 = vcmask 134152
    %44 = vst.msk [vmem:[#allocation2] sm:$0xf] %vm43, %v41
    %v45 = vld [vmem:[%s1] sm:$0xff]
    %v46 = vld [vmem:[#allocation2] sm:$0xf]
    %s47 = scalar_lea.vmem %s1, 8
    %v48 = vld [vmem:[%s47] sm:$0xff]
    %50 = vrot.lane.b32.xlu0 %v46, 127
    %v51 = vpop.permute.xlu0 %50
    %vm52 = vcmask 31744
    %v54 = vsel %vm52, %v48, 0
    %vm56 = vcmask 1043456
    %v57 = vsel %vm56, %v51, 0
    %59 = vmatpush.msra.mxu0 0.0
    %60 = vmatpush.msra.mxu0 0.0
    %61 = vmatpush.msra.mxu0 0.0
    %62 = vmatpush.msra.mxu0 0.0
    %63 = vmatpush.msra.mxu0 0.0
    %64 = vmatpush.msra.mxu0 0.0
    %65 = vmatpush.msra.mxu0 0.0
    %66 = vmatpush.msra.mxu0 0.0
    %67 = vmatpush.msra.mxu0 0.0
    %68 = vmatpush.msra.mxu0 0.0
    %69 = vmatpush.msra.mxu0 0.0
    %70 = vmatpush.msra.mxu0 0.0
    %71 = vmatpush.msra.mxu0 0.0
    %72 = vmatpush.msra.mxu0 0.0
    %73 = vmatpush.msra.mxu0 0.0
    %74 = vmatpush.msra.mxu0 %v57
    %75 = vmatmul.f32.gmra.mxu0 %v54
    %v76 = vpop.f32.mrf.mxu0
    %v77 = vadd.f32 0.0, %v76
    %78 = vdwg.mxu0
    %v80 = vsel %vm52, %v45, 0
    %v82 = vsel %vm56, %v46, 0
    %84 = vmatpush.msra.mxu0 0.0
    %85 = vmatpush.msra.mxu0 0.0
    %86 = vmatpush.msra.mxu0 0.0
    %87 = vmatpush.msra.mxu0 0.0
    %88 = vmatpush.msra.mxu0 0.0
    %89 = vmatpush.msra.mxu0 0.0
    %90 = vmatpush.msra.mxu0 0.0
    %91 = vmatpush.msra.mxu0 0.0
    %92 = vmatpush.msra.mxu0 0.0
    %93 = vmatpush.msra.mxu0 0.0
    %94 = vmatpush.msra.mxu0 0.0
    %95 = vmatpush.msra.mxu0 0.0
    %96 = vmatpush.msra.mxu0 0.0
    %97 = vmatpush.msra.mxu0 0.0
    %98 = vmatpush.msra.mxu0 0.0
    %99 = vmatpush.msra.mxu0 %v82
    %100 = vmatmul.f32.gmra.mxu0 %v80
    %v101 = vpop.f32.mrf.mxu0
    %v102 = vadd.f32 %v77, %v101
    %103 = vdwg.mxu0
    %s104 = scalar_lea.vmem %s1, 16
    %v105 = vld [vmem:[%s104] sm:$0xff]
    %106 = vrot.lane.b32.xlu0 %v46, 126
    %v107 = vpop.permute.xlu0 %106
    %v109 = vsel %vm52, %v105, 0
    %v111 = vsel %vm56, %v107, 0
    %113 = vmatpush.msra.mxu0 0.0
    %114 = vmatpush.msra.mxu0 0.0
    %115 = vmatpush.msra.mxu0 0.0
    %116 = vmatpush.msra.mxu0 0.0
    %117 = vmatpush.msra.mxu0 0.0
    %118 = vmatpush.msra.mxu0 0.0
    %119 = vmatpush.msra.mxu0 0.0
    %120 = vmatpush.msra.mxu0 0.0
    %121 = vmatpush.msra.mxu0 0.0
    %122 = vmatpush.msra.mxu0 0.0
    %123 = vmatpush.msra.mxu0 0.0
    %124 = vmatpush.msra.mxu0 0.0
    %125 = vmatpush.msra.mxu0 0.0
    %126 = vmatpush.msra.mxu0 0.0
    %127 = vmatpush.msra.mxu0 0.0
    %128 = vmatpush.msra.mxu0 %v111
    %129 = vmatmul.f32.gmra.mxu0 %v109
    %v130 = vpop.f32.mrf.mxu0
    %v131 = vadd.f32 0.0, %v130
    %132 = vdwg.mxu0
    %v133 = vadd.f32 %v102, %v131
    %v134 = vld [vmem:[%s2] sm:$0xff]
    %136 = vset.pattern.permute.xlu0 0
    %137 = vperm.xlu0 %136, %v134
    %v138 = vpop.permute.xlu0 %137
    %v140 = vadd.f32 %v133, %v138
    %v141 = vmax.f32 %v140, 0.0
    %143 = vrot.lane.b32.xlu0 %v141, 1
    %v144 = vpop.permute.xlu0 %143
    %vm146 = vcmask 138248
    %147 = vst.msk [vmem:[#allocation3] sm:$0xff] %vm146, %v144
    %v148 = vld [vmem:[%s3] sm:$0xff]
    %v149 = vld [vmem:[#allocation3] sm:$0xff]
    %s150 = scalar_lea.vmem %s3, 8
    %v151 = vld [vmem:[%s150] sm:$0xff]
    %153 = vrot.lane.b32.xlu0 %v149, 127
    %v154 = vpop.permute.xlu0 %153
    %vm156 = vcmask 64512
    %v158 = vsel %vm156, %v151, 0
    %160 = vmatpush.msra.mxu0 0.0
    %161 = vmatpush.msra.mxu0 0.0
    %162 = vmatpush.msra.mxu0 0.0
    %163 = vmatpush.msra.mxu0 0.0
    %164 = vmatpush.msra.mxu0 0.0
    %165 = vmatpush.msra.mxu0 0.0
    %166 = vmatpush.msra.mxu0 0.0
    %167 = vmatpush.msra.mxu0 0.0
    %168 = vmatpush.msra.mxu0 0.0
    %169 = vmatpush.msra.mxu0 0.0
    %170 = vmatpush.msra.mxu0 0.0
    %171 = vmatpush.msra.mxu0 0.0
    %172 = vmatpush.msra.mxu0 0.0
    %173 = vmatpush.msra.mxu0 0.0
    %174 = vmatpush.msra.mxu0 0.0
    %175 = vmatpush.msra.mxu0 %v154
    %176 = vmatmul.f32.gmra.mxu0 %v158
    %v177 = vpop.f32.mrf.mxu0
    %v178 = vadd.f32 0.0, %v177
    %179 = vdwg.mxu0
    %v181 = vsel %vm156, %v148, 0
    %183 = vmatpush.msra.mxu0 0.0
    %184 = vmatpush.msra.mxu0 0.0
    %185 = vmatpush.msra.mxu0 0.0
    %186 = vmatpush.msra.mxu0 0.0
    %187 = vmatpush.msra.mxu0 0.0
    %188 = vmatpush.msra.mxu0 0.0
    %189 = vmatpush.msra.mxu0 0.0
    %190 = vmatpush.msra.mxu0 0.0
    %191 = vmatpush.msra.mxu0 0.0
    %192 = vmatpush.msra.mxu0 0.0
    %193 = vmatpush.msra.mxu0 0.0
    %194 = vmatpush.msra.mxu0 0.0
    %195 = vmatpush.msra.mxu0 0.0
    %196 = vmatpush.msra.mxu0 0.0
    %197 = vmatpush.msra.mxu0 0.0
    %198 = vmatpush.msra.mxu0 %v149
    %199 = vmatmul.f32.gmra.mxu0 %v181
    %v200 = vpop.f32.mrf.mxu0
    %v201 = vadd.f32 %v178, %v200
    %202 = vdwg.mxu0
    %s203 = scalar_lea.vmem %s3, 16
    %v204 = vld [vmem:[%s203] sm:$0xff]
    %205 = vrot.lane.b32.xlu0 %v149, 126
    %v206 = vpop.permute.xlu0 %205
    %v209 = vsel %vm156, %v204, 0
    %211 = vmatpush.msra.mxu0 0.0
    %212 = vmatpush.msra.mxu0 0.0
    %213 = vmatpush.msra.mxu0 0.0
    %214 = vmatpush.msra.mxu0 0.0
    %215 = vmatpush.msra.mxu0 0.0
    %216 = vmatpush.msra.mxu0 0.0
    %217 = vmatpush.msra.mxu0 0.0
    %218 = vmatpush.msra.mxu0 0.0
    %219 = vmatpush.msra.mxu0 0.0
    %220 = vmatpush.msra.mxu0 0.0
    %221 = vmatpush.msra.mxu0 0.0
    %222 = vmatpush.msra.mxu0 0.0
    %223 = vmatpush.msra.mxu0 0.0
    %224 = vmatpush.msra.mxu0 0.0
    %225 = vmatpush.msra.mxu0 0.0
    %226 = vmatpush.msra.mxu0 %v206
    %227 = vmatmul.f32.gmra.mxu0 %v209
    %v228 = vpop.f32.mrf.mxu0
    %v229 = vadd.f32 0.0, %v228
    %230 = vdwg.mxu0
    %v231 = vadd.f32 %v201, %v229
    %v232 = vld [vmem:[%s4] sm:$0xff]
    %234 = vset.pattern.permute.xlu0 0
    %235 = vperm.xlu0 %234, %v232
    %v236 = vpop.permute.xlu0 %235
    %v238 = vadd.f32 %v231, %v236
    %v239 = vmax.f32 %v238, 0.0
    %241 = vrot.lane.b32.xlu0 %v239, 1
    %v242 = vpop.permute.xlu0 %241
    %244 = vst.msk [vmem:[#allocation4] sm:$0xff] %vm146, %v242
    %v245 = vld [vmem:[%s5] sm:$0xff]
    %v246 = vld [vmem:[#allocation4] sm:$0xff]
    %s247 = scalar_lea.vmem %s5, 8
    %v248 = vld [vmem:[%s247] sm:$0xff]
    %250 = vrot.lane.b32.xlu0 %v246, 127
    %v251 = vpop.permute.xlu0 %250
    %v254 = vsel %vm156, %v248, 0
    %256 = vmatpush.msra.mxu0 0.0
    %257 = vmatpush.msra.mxu0 0.0
    %258 = vmatpush.msra.mxu0 0.0
    %259 = vmatpush.msra.mxu0 0.0
    %260 = vmatpush.msra.mxu0 0.0
    %261 = vmatpush.msra.mxu0 0.0
    %262 = vmatpush.msra.mxu0 0.0
    %263 = vmatpush.msra.mxu0 0.0
    %264 = vmatpush.msra.mxu0 0.0
    %265 = vmatpush.msra.mxu0 0.0
    %266 = vmatpush.msra.mxu0 0.0
    %267 = vmatpush.msra.mxu0 0.0
    %268 = vmatpush.msra.mxu0 0.0
    %269 = vmatpush.msra.mxu0 0.0
    %270 = vmatpush.msra.mxu0 0.0
    %271 = vmatpush.msra.mxu0 %v251
    %272 = vmatmul.f32.gmra.mxu0 %v254
    %v273 = vpop.f32.mrf.mxu0
    %v274 = vadd.f32 0.0, %v273
    %275 = vdwg.mxu0
    %v277 = vsel %vm156, %v245, 0
    %279 = vmatpush.msra.mxu0 0.0
    %280 = vmatpush.msra.mxu0 0.0
    %281 = vmatpush.msra.mxu0 0.0
    %282 = vmatpush.msra.mxu0 0.0
    %283 = vmatpush.msra.mxu0 0.0
    %284 = vmatpush.msra.mxu0 0.0
    %285 = vmatpush.msra.mxu0 0.0
    %286 = vmatpush.msra.mxu0 0.0
    %287 = vmatpush.msra.mxu0 0.0
    %288 = vmatpush.msra.mxu0 0.0
    %289 = vmatpush.msra.mxu0 0.0
    %290 = vmatpush.msra.mxu0 0.0
    %291 = vmatpush.msra.mxu0 0.0
    %292 = vmatpush.msra.mxu0 0.0
    %293 = vmatpush.msra.mxu0 0.0
    %294 = vmatpush.msra.mxu0 %v246
    %295 = vmatmul.f32.gmra.mxu0 %v277
    %v296 = vpop.f32.mrf.mxu0
    %v297 = vadd.f32 %v274, %v296
    %298 = vdwg.mxu0
    %s299 = scalar_lea.vmem %s5, 16
    %v300 = vld [vmem:[%s299] sm:$0xff]
    %301 = vrot.lane.b32.xlu0 %v246, 126
    %v302 = vpop.permute.xlu0 %301
    %v305 = vsel %vm156, %v300, 0
    %307 = vmatpush.msra.mxu0 0.0
    %308 = vmatpush.msra.mxu0 0.0
    %309 = vmatpush.msra.mxu0 0.0
    %310 = vmatpush.msra.mxu0 0.0
    %311 = vmatpush.msra.mxu0 0.0
    %312 = vmatpush.msra.mxu0 0.0
    %313 = vmatpush.msra.mxu0 0.0
    %314 = vmatpush.msra.mxu0 0.0
    %315 = vmatpush.msra.mxu0 0.0
    %316 = vmatpush.msra.mxu0 0.0
    %317 = vmatpush.msra.mxu0 0.0
    %318 = vmatpush.msra.mxu0 0.0
    %319 = vmatpush.msra.mxu0 0.0
    %320 = vmatpush.msra.mxu0 0.0
    %321 = vmatpush.msra.mxu0 0.0
    %322 = vmatpush.msra.mxu0 %v302
    %323 = vmatmul.f32.gmra.mxu0 %v305
    %v324 = vpop.f32.mrf.mxu0
    %v325 = vadd.f32 0.0, %v324
    %326 = vdwg.mxu0
    %v327 = vadd.f32 %v297, %v325
    %v328 = vld [vmem:[%s6] sm:$0xff]
    %330 = vset.pattern.permute.xlu0 0
    %331 = vperm.xlu0 %330, %v328
    %v332 = vpop.permute.xlu0 %331
    %v334 = vadd.f32 %v327, %v332
    %v335 = vmax.f32 %v334, 0.0
    %v336 = vld [vmem:[%s7] sm:$0xff]
    %v337 = vld [vmem:[#allocation2] sm:$0xf]
    %s338 = scalar_lea.vmem %s7, 8
    %v339 = vld [vmem:[%s338] sm:$0xff]
    %341 = vrot.lane.b32.xlu0 %v337, 127
    %v342 = vpop.permute.xlu0 %341
    %v344 = vsel %vm52, %v339, 0
    %v346 = vsel %vm56, %v342, 0
    %348 = vmatpush.msra.mxu0 0.0
    %349 = vmatpush.msra.mxu0 0.0
    %350 = vmatpush.msra.mxu0 0.0
    %351 = vmatpush.msra.mxu0 0.0
    %352 = vmatpush.msra.mxu0 0.0
    %353 = vmatpush.msra.mxu0 0.0
    %354 = vmatpush.msra.mxu0 0.0
    %355 = vmatpush.msra.mxu0 0.0
    %356 = vmatpush.msra.mxu0 0.0
    %357 = vmatpush.msra.mxu0 0.0
    %358 = vmatpush.msra.mxu0 0.0
    %359 = vmatpush.msra.mxu0 0.0
    %360 = vmatpush.msra.mxu0 0.0
    %361 = vmatpush.msra.mxu0 0.0
    %362 = vmatpush.msra.mxu0 0.0
    %363 = vmatpush.msra.mxu0 %v346
    %364 = vmatmul.f32.gmra.mxu0 %v344
    %v365 = vpop.f32.mrf.mxu0
    %v366 = vadd.f32 0.0, %v365
    %367 = vdwg.mxu0
    %v369 = vsel %vm52, %v336, 0
    %v371 = vsel %vm56, %v337, 0
    %373 = vmatpush.msra.mxu0 0.0
    %374 = vmatpush.msra.mxu0 0.0
    %375 = vmatpush.msra.mxu0 0.0
    %376 = vmatpush.msra.mxu0 0.0
    %377 = vmatpush.msra.mxu0 0.0
    %378 = vmatpush.msra.mxu0 0.0
    %379 = vmatpush.msra.mxu0 0.0
    %380 = vmatpush.msra.mxu0 0.0
    %381 = vmatpush.msra.mxu0 0.0
    %382 = vmatpush.msra.mxu0 0.0
    %383 = vmatpush.msra.mxu0 0.0
    %384 = vmatpush.msra.mxu0 0.0
    %385 = vmatpush.msra.mxu0 0.0
    %386 = vmatpush.msra.mxu0 0.0
    %387 = vmatpush.msra.mxu0 0.0
    %388 = vmatpush.msra.mxu0 %v371
    %389 = vmatmul.f32.gmra.mxu0 %v369
    %v390 = vpop.f32.mrf.mxu0
    %v391 = vadd.f32 %v366, %v390
    %392 = vdwg.mxu0
    %s393 = scalar_lea.vmem %s7, 16
    %v394 = vld [vmem:[%s393] sm:$0xff]
    %395 = vrot.lane.b32.xlu0 %v337, 126
    %v396 = vpop.permute.xlu0 %395
    %v398 = vsel %vm52, %v394, 0
    %v400 = vsel %vm56, %v396, 0
    %402 = vmatpush.msra.mxu0 0.0
    %403 = vmatpush.msra.mxu0 0.0
    %404 = vmatpush.msra.mxu0 0.0
    %405 = vmatpush.msra.mxu0 0.0
    %406 = vmatpush.msra.mxu0 0.0
    %407 = vmatpush.msra.mxu0 0.0
    %408 = vmatpush.msra.mxu0 0.0
    %409 = vmatpush.msra.mxu0 0.0
    %410 = vmatpush.msra.mxu0 0.0
    %411 = vmatpush.msra.mxu0 0.0
    %412 = vmatpush.msra.mxu0 0.0
    %413 = vmatpush.msra.mxu0 0.0
    %414 = vmatpush.msra.mxu0 0.0
    %415 = vmatpush.msra.mxu0 0.0
    %416 = vmatpush.msra.mxu0 0.0
    %417 = vmatpush.msra.mxu0 %v400
    %418 = vmatmul.f32.gmra.mxu0 %v398
    %v419 = vpop.f32.mrf.mxu0
    %v420 = vadd.f32 0.0, %v419
    %421 = vdwg.mxu0
    %v422 = vadd.f32 %v391, %v420
    %v423 = vld [vmem:[%s8] sm:$0xff]
    %425 = vset.pattern.permute.xlu0 0
    %426 = vperm.xlu0 %425, %v423
    %v427 = vpop.permute.xlu0 %426
    %v429 = vadd.f32 %v422, %v427
    %v430 = vadd.f32 %v335, %v429
    %v431 = vmax.f32 %v430, 0.0
    %vm432 = vcmask 130048
    %433 = vst.msk [vmem:[#allocation5] sm:$0xff] %vm432, %v431
    %s434 = scalar_lea.vmem %s0, 4
    %v435 = vld [vmem:[%s434] sm:$0xf]
    %437 = vrot.lane.b32.xlu0 %v435, 1
    %v438 = vpop.permute.xlu0 %437
    %440 = vst.msk [vmem:[#allocation2] sm:$0xf] %vm43, %v438
    %v441 = vld [vmem:[%s1] sm:$0xff]
    %v442 = vld [vmem:[#allocation2] sm:$0xf]
    %v443 = vld [vmem:[%s47] sm:$0xff]
    %445 = vrot.lane.b32.xlu0 %v442, 127
    %v446 = vpop.permute.xlu0 %445
    %v448 = vsel %vm52, %v443, 0
    %v450 = vsel %vm56, %v446, 0
    %452 = vmatpush.msra.mxu0 0.0
    %453 = vmatpush.msra.mxu0 0.0
    %454 = vmatpush.msra.mxu0 0.0
    %455 = vmatpush.msra.mxu0 0.0
    %456 = vmatpush.msra.mxu0 0.0
    %457 = vmatpush.msra.mxu0 0.0
    %458 = vmatpush.msra.mxu0 0.0
    %459 = vmatpush.msra.mxu0 0.0
    %460 = vmatpush.msra.mxu0 0.0
    %461 = vmatpush.msra.mxu0 0.0
    %462 = vmatpush.msra.mxu0 0.0
    %463 = vmatpush.msra.mxu0 0.0
    %464 = vmatpush.msra.mxu0 0.0
    %465 = vmatpush.msra.mxu0 0.0
    %466 = vmatpush.msra.mxu0 0.0
    %467 = vmatpush.msra.mxu0 %v450
    %468 = vmatmul.f32.gmra.mxu0 %v448
    %v469 = vpop.f32.mrf.mxu0
    %v470 = vadd.f32 0.0, %v469
    %471 = vdwg.mxu0
    %v473 = vsel %vm52, %v441, 0
    %v475 = vsel %vm56, %v442, 0
    %477 = vmatpush.msra.mxu0 0.0
    %478 = vmatpush.msra.mxu0 0.0
    %479 = vmatpush.msra.mxu0 0.0
    %480 = vmatpush.msra.mxu0 0.0
    %481 = vmatpush.msra.mxu0 0.0
    %482 = vmatpush.msra.mxu0 0.0
    %483 = vmatpush.msra.mxu0 0.0
    %484 = vmatpush.msra.mxu0 0.0
    %485 = vmatpush.msra.mxu0 0.0
    %486 = vmatpush.msra.mxu0 0.0
    %487 = vmatpush.msra.mxu0 0.0
    %488 = vmatpush.msra.mxu0 0.0
    %489 = vmatpush.msra.mxu0 0.0
    %490 = vmatpush.msra.mxu0 0.0
    %491 = vmatpush.msra.mxu0 0.0
    %492 = vmatpush.msra.mxu0 %v475
    %493 = vmatmul.f32.gmra.mxu0 %v473
    %v494 = vpop.f32.mrf.mxu0
    %v495 = vadd.f32 %v470, %v494
    %496 = vdwg.mxu0
    %v497 = vld [vmem:[%s104] sm:$0xff]
    %498 = vrot.lane.b32.xlu0 %v442, 126
    %v499 = vpop.permute.xlu0 %498
    %v501 = vsel %vm52, %v497, 0
    %v503 = vsel %vm56, %v499, 0
    %505 = vmatpush.msra.mxu0 0.0
    %506 = vmatpush.msra.mxu0 0.0
    %507 = vmatpush.msra.mxu0 0.0
    %508 = vmatpush.msra.mxu0 0.0
    %509 = vmatpush.msra.mxu0 0.0
    %510 = vmatpush.msra.mxu0 0.0
    %511 = vmatpush.msra.mxu0 0.0
    %512 = vmatpush.msra.mxu0 0.0
    %513 = vmatpush.msra.mxu0 0.0
    %514 = vmatpush.msra.mxu0 0.0
    %515 = vmatpush.msra.mxu0 0.0
    %516 = vmatpush.msra.mxu0 0.0
    %517 = vmatpush.msra.mxu0 0.0
    %518 = vmatpush.msra.mxu0 0.0
    %519 = vmatpush.msra.mxu0 0.0
    %520 = vmatpush.msra.mxu0 %v503
    %521 = vmatmul.f32.gmra.mxu0 %v501
    %v522 = vpop.f32.mrf.mxu0
    %v523 = vadd.f32 0.0, %v522
    %524 = vdwg.mxu0
    %v525 = vadd.f32 %v495, %v523
    %v526 = vld [vmem:[%s2] sm:$0xff]
    %528 = vset.pattern.permute.xlu0 0
    %529 = vperm.xlu0 %528, %v526
    %v530 = vpop.permute.xlu0 %529
    %v532 = vadd.f32 %v525, %v530
    %v533 = vmax.f32 %v532, 0.0
    %535 = vrot.lane.b32.xlu0 %v533, 1
    %v536 = vpop.permute.xlu0 %535
    %538 = vst.msk [vmem:[#allocation3] sm:$0xff] %vm146, %v536
    %v539 = vld [vmem:[%s3] sm:$0xff]
    %v540 = vld [vmem:[#allocation3] sm:$0xff]
    %v541 = vld [vmem:[%s150] sm:$0xff]
    %543 = vrot.lane.b32.xlu0 %v540, 127
    %v544 = vpop.permute.xlu0 %543
    %v547 = vsel %vm156, %v541, 0
    %549 = vmatpush.msra.mxu0 0.0
    %550 = vmatpush.msra.mxu0 0.0
    %551 = vmatpush.msra.mxu0 0.0
    %552 = vmatpush.msra.mxu0 0.0
    %553 = vmatpush.msra.mxu0 0.0
    %554 = vmatpush.msra.mxu0 0.0
    %555 = vmatpush.msra.mxu0 0.0
    %556 = vmatpush.msra.mxu0 0.0
    %557 = vmatpush.msra.mxu0 0.0
    %558 = vmatpush.msra.mxu0 0.0
    %559 = vmatpush.msra.mxu0 0.0
    %560 = vmatpush.msra.mxu0 0.0
    %561 = vmatpush.msra.mxu0 0.0
    %562 = vmatpush.msra.mxu0 0.0
    %563 = vmatpush.msra.mxu0 0.0
    %564 = vmatpush.msra.mxu0 %v544
    %565 = vmatmul.f32.gmra.mxu0 %v547
    %v566 = vpop.f32.mrf.mxu0
    %v567 = vadd.f32 0.0, %v566
    %568 = vdwg.mxu0
    %v570 = vsel %vm156, %v539, 0
    %572 = vmatpush.msra.mxu0 0.0
    %573 = vmatpush.msra.mxu0 0.0
    %574 = vmatpush.msra.mxu0 0.0
    %575 = vmatpush.msra.mxu0 0.0
    %576 = vmatpush.msra.mxu0 0.0
    %577 = vmatpush.msra.mxu0 0.0
    %578 = vmatpush.msra.mxu0 0.0
    %579 = vmatpush.msra.mxu0 0.0
    %580 = vmatpush.msra.mxu0 0.0
    %581 = vmatpush.msra.mxu0 0.0
    %582 = vmatpush.msra.mxu0 0.0
    %583 = vmatpush.msra.mxu0 0.0
    %584 = vmatpush.msra.mxu0 0.0
    %585 = vmatpush.msra.mxu0 0.0
    %586 = vmatpush.msra.mxu0 0.0
    %587 = vmatpush.msra.mxu0 %v540
    %588 = vmatmul.f32.gmra.mxu0 %v570
    %v589 = vpop.f32.mrf.mxu0
    %v590 = vadd.f32 %v567, %v589
    %591 = vdwg.mxu0
    %v592 = vld [vmem:[%s203] sm:$0xff]
    %593 = vrot.lane.b32.xlu0 %v540, 126
    %v594 = vpop.permute.xlu0 %593
    %v597 = vsel %vm156, %v592, 0
    %599 = vmatpush.msra.mxu0 0.0
    %600 = vmatpush.msra.mxu0 0.0
    %601 = vmatpush.msra.mxu0 0.0
    %602 = vmatpush.msra.mxu0 0.0
    %603 = vmatpush.msra.mxu0 0.0
    %604 = vmatpush.msra.mxu0 0.0
    %605 = vmatpush.msra.mxu0 0.0
    %606 = vmatpush.msra.mxu0 0.0
    %607 = vmatpush.msra.mxu0 0.0
    %608 = vmatpush.msra.mxu0 0.0
    %609 = vmatpush.msra.mxu0 0.0
    %610 = vmatpush.msra.mxu0 0.0
    %611 = vmatpush.msra.mxu0 0.0
    %612 = vmatpush.msra.mxu0 0.0
    %613 = vmatpush.msra.mxu0 0.0
    %614 = vmatpush.msra.mxu0 %v594
    %615 = vmatmul.f32.gmra.mxu0 %v597
    %v616 = vpop.f32.mrf.mxu0
    %v617 = vadd.f32 0.0, %v616
    %618 = vdwg.mxu0
    %v619 = vadd.f32 %v590, %v617
    %v620 = vld [vmem:[%s4] sm:$0xff]
    %622 = vset.pattern.permute.xlu0 0
    %623 = vperm.xlu0 %622, %v620
    %v624 = vpop.permute.xlu0 %623
    %v626 = vadd.f32 %v619, %v624
    %v627 = vmax.f32 %v626, 0.0
    %629 = vrot.lane.b32.xlu0 %v627, 1
    %v630 = vpop.permute.xlu0 %629
    %632 = vst.msk [vmem:[#allocation4] sm:$0xff] %vm146, %v630
    %v633 = vld [vmem:[%s5] sm:$0xff]
    %v634 = vld [vmem:[#allocation4] sm:$0xff]
    %v635 = vld [vmem:[%s247] sm:$0xff]
    %637 = vrot.lane.b32.xlu0 %v634, 127
    %v638 = vpop.permute.xlu0 %637
    %v641 = vsel %vm156, %v635, 0
    %643 = vmatpush.msra.mxu0 0.0
    %644 = vmatpush.msra.mxu0 0.0
    %645 = vmatpush.msra.mxu0 0.0
    %646 = vmatpush.msra.mxu0 0.0
    %647 = vmatpush.msra.mxu0 0.0
    %648 = vmatpush.msra.mxu0 0.0
    %649 = vmatpush.msra.mxu0 0.0
    %650 = vmatpush.msra.mxu0 0.0
    %651 = vmatpush.msra.mxu0 0.0
    %652 = vmatpush.msra.mxu0 0.0
    %653 = vmatpush.msra.mxu0 0.0
    %654 = vmatpush.msra.mxu0 0.0
    %655 = vmatpush.msra.mxu0 0.0
    %656 = vmatpush.msra.mxu0 0.0
    %657 = vmatpush.msra.mxu0 0.0
    %658 = vmatpush.msra.mxu0 %v638
    %659 = vmatmul.f32.gmra.mxu0 %v641
    %v660 = vpop.f32.mrf.mxu0
    %v661 = vadd.f32 0.0, %v660
    %662 = vdwg.mxu0
    %v664 = vsel %vm156, %v633, 0
    %666 = vmatpush.msra.mxu0 0.0
    %667 = vmatpush.msra.mxu0 0.0
    %668 = vmatpush.msra.mxu0 0.0
    %669 = vmatpush.msra.mxu0 0.0
    %670 = vmatpush.msra.mxu0 0.0
    %671 = vmatpush.msra.mxu0 0.0
    %672 = vmatpush.msra.mxu0 0.0
    %673 = vmatpush.msra.mxu0 0.0
    %674 = vmatpush.msra.mxu0 0.0
    %675 = vmatpush.msra.mxu0 0.0
    %676 = vmatpush.msra.mxu0 0.0
    %677 = vmatpush.msra.mxu0 0.0
    %678 = vmatpush.msra.mxu0 0.0
    %679 = vmatpush.msra.mxu0 0.0
    %680 = vmatpush.msra.mxu0 0.0
    %681 = vmatpush.msra.mxu0 %v634
    %682 = vmatmul.f32.gmra.mxu0 %v664
    %v683 = vpop.f32.mrf.mxu0
    %v684 = vadd.f32 %v661, %v683
    %685 = vdwg.mxu0
    %v686 = vld [vmem:[%s299] sm:$0xff]
    %687 = vrot.lane.b32.xlu0 %v634, 126
    %v688 = vpop.permute.xlu0 %687
    %v691 = vsel %vm156, %v686, 0
    %693 = vmatpush.msra.mxu0 0.0
    %694 = vmatpush.msra.mxu0 0.0
    %695 = vmatpush.msra.mxu0 0.0
    %696 = vmatpush.msra.mxu0 0.0
    %697 = vmatpush.msra.mxu0 0.0
    %698 = vmatpush.msra.mxu0 0.0
    %699 = vmatpush.msra.mxu0 0.0
    %700 = vmatpush.msra.mxu0 0.0
    %701 = vmatpush.msra.mxu0 0.0
    %702 = vmatpush.msra.mxu0 0.0
    %703 = vmatpush.msra.mxu0 0.0
    %704 = vmatpush.msra.mxu0 0.0
    %705 = vmatpush.msra.mxu0 0.0
    %706 = vmatpush.msra.mxu0 0.0
    %707 = vmatpush.msra.mxu0 0.0
    %708 = vmatpush.msra.mxu0 %v688
    %709 = vmatmul.f32.gmra.mxu0 %v691
    %v710 = vpop.f32.mrf.mxu0
    %v711 = vadd.f32 0.0, %v710
    %712 = vdwg.mxu0
    %v713 = vadd.f32 %v684, %v711
    %v714 = vld [vmem:[%s6] sm:$0xff]
    %716 = vset.pattern.permute.xlu0 0
    %717 = vperm.xlu0 %716, %v714
    %v718 = vpop.permute.xlu0 %717
    %v720 = vadd.f32 %v713, %v718
    %v721 = vmax.f32 %v720, 0.0
    %v722 = vld [vmem:[%s7] sm:$0xff]
    %v723 = vld [vmem:[#allocation2] sm:$0xf]
    %v724 = vld [vmem:[%s338] sm:$0xff]
    %726 = vrot.lane.b32.xlu0 %v723, 127
    %v727 = vpop.permute.xlu0 %726
    %v729 = vsel %vm52, %v724, 0
    %v731 = vsel %vm56, %v727, 0
    %733 = vmatpush.msra.mxu0 0.0
    %734 = vmatpush.msra.mxu0 0.0
    %735 = vmatpush.msra.mxu0 0.0
    %736 = vmatpush.msra.mxu0 0.0
    %737 = vmatpush.msra.mxu0 0.0
    %738 = vmatpush.msra.mxu0 0.0
    %739 = vmatpush.msra.mxu0 0.0
    %740 = vmatpush.msra.mxu0 0.0
    %741 = vmatpush.msra.mxu0 0.0
    %742 = vmatpush.msra.mxu0 0.0
    %743 = vmatpush.msra.mxu0 0.0
    %744 = vmatpush.msra.mxu0 0.0
    %745 = vmatpush.msra.mxu0 0.0
    %746 = vmatpush.msra.mxu0 0.0
    %747 = vmatpush.msra.mxu0 0.0
    %748 = vmatpush.msra.mxu0 %v731
    %749 = vmatmul.f32.gmra.mxu0 %v729
    %v750 = vpop.f32.mrf.mxu0
    %v751 = vadd.f32 0.0, %v750
    %752 = vdwg.mxu0
    %v754 = vsel %vm52, %v722, 0
    %v756 = vsel %vm56, %v723, 0
    %758 = vmatpush.msra.mxu0 0.0
    %759 = vmatpush.msra.mxu0 0.0
    %760 = vmatpush.msra.mxu0 0.0
    %761 = vmatpush.msra.mxu0 0.0
    %762 = vmatpush.msra.mxu0 0.0
    %763 = vmatpush.msra.mxu0 0.0
    %764 = vmatpush.msra.mxu0 0.0
    %765 = vmatpush.msra.mxu0 0.0
    %766 = vmatpush.msra.mxu0 0.0
    %767 = vmatpush.msra.mxu0 0.0
    %768 = vmatpush.msra.mxu0 0.0
    %769 = vmatpush.msra.mxu0 0.0
    %770 = vmatpush.msra.mxu0 0.0
    %771 = vmatpush.msra.mxu0 0.0
    %772 = vmatpush.msra.mxu0 0.0
    %773 = vmatpush.msra.mxu0 %v756
    %774 = vmatmul.f32.gmra.mxu0 %v754
    %v775 = vpop.f32.mrf.mxu0
    %v776 = vadd.f32 %v751, %v775
    %777 = vdwg.mxu0
    %v778 = vld [vmem:[%s393] sm:$0xff]
    %779 = vrot.lane.b32.xlu0 %v723, 126
    %v780 = vpop.permute.xlu0 %779
    %v782 = vsel %vm52, %v778, 0
    %v784 = vsel %vm56, %v780, 0
    %786 = vmatpush.msra.mxu0 0.0
    %787 = vmatpush.msra.mxu0 0.0
    %788 = vmatpush.msra.mxu0 0.0
    %789 = vmatpush.msra.mxu0 0.0
    %790 = vmatpush.msra.mxu0 0.0
    %791 = vmatpush.msra.mxu0 0.0
    %792 = vmatpush.msra.mxu0 0.0
    %793 = vmatpush.msra.mxu0 0.0
    %794 = vmatpush.msra.mxu0 0.0
    %795 = vmatpush.msra.mxu0 0.0
    %796 = vmatpush.msra.mxu0 0.0
    %797 = vmatpush.msra.mxu0 0.0
    %798 = vmatpush.msra.mxu0 0.0
    %799 = vmatpush.msra.mxu0 0.0
    %800 = vmatpush.msra.mxu0 0.0
    %801 = vmatpush.msra.mxu0 %v784
    %802 = vmatmul.f32.gmra.mxu0 %v782
    %v803 = vpop.f32.mrf.mxu0
    %v804 = vadd.f32 0.0, %v803
    %805 = vdwg.mxu0
    %v806 = vadd.f32 %v776, %v804
    %v807 = vld [vmem:[%s8] sm:$0xff]
    %809 = vset.pattern.permute.xlu0 0
    %810 = vperm.xlu0 %809, %v807
    %v811 = vpop.permute.xlu0 %810
    %v813 = vadd.f32 %v806, %v811
    %v814 = vadd.f32 %v721, %v813
    %v815 = vmax.f32 %v814, 0.0
    %s816 = scalar_lea.vmem [#allocation5], 8
    %817 = vst.msk [vmem:[%s816] sm:$0xff] %vm432, %v815
    // Predicated region
    $region38: #{convolution_block_pallas.1} parent=1 // pred_check
      _
    $region39: #{convolution_block_pallas.1} parent=1 // pred_check_branch
      %819 = sbr.rel (0) target = $region41
    $region40: #{convolution_block_pallas.1} parent=1 // pred_region
      %821 = vsyncadd [#allocation6], 0
      %s822 = sshll.u32 [#allocation5], 4
      %s823 = int_to_ptr.vmem [resolvable:$true] %s822
      %s824 = sshll.u32 %s9, 4
      %s825 = int_to_ptr.hbm [resolvable:$true] %s824
      %830 = dma.vmem_to_hbm [thread:$0]  %s823, 256, %s825, [#allocation6], 128, 128, 8
    $region41: #{convolution_block_pallas.1} parent=1 // pred_fallthru
      _
    // Predicated region
    $region42: #{convolution_block_pallas.1} parent=1 // pred_check
      _
    $region43: #{convolution_block_pallas.1} parent=1 // pred_check_branch
      %832 = sbr.rel (0) target = $region45
    $region44: #{convolution_block_pallas.1} parent=1 // pred_region
      %834 = dma.done [#allocation6], 256
    $region45: #{convolution_block_pallas.1} parent=1 // pred_fallthru
      _
    %835 = vsyncpa [#allocation6], 1

</llo_original>
